<compile_context>
chip_gen: v7x
topology: tpu7x:2x2x1
jax: 0.10.0
libtpu: 0.0.40
codegen_flags: <defaults>
</compile_context>

<pallas_src>
import math

import jax
import jax.numpy as jnp
from jax.experimental import pallas as pl
from jax.experimental.pallas import tpu as pltpu


def _round_up(x: int, m: int) -> int:
    return ((x + m - 1) // m) * m


def _mlp_kernel(x_ref, w_ref, b_ref, o_ref, acc_ref):
    # x_ref: (tm, tk)   row tile of the flattened input
    # w_ref: (tk, tn)   weight tile in (K, N) layout  -> natural MXU operand
    # b_ref: (1, tn)    bias tile
    # o_ref: (tm, tn)   output tile (resident across the K axis)
    # acc_ref: (tm, tn) f32 accumulator scratch
    k = pl.program_id(2)

    @pl.when(k == 0)
    def _():
        acc_ref[...] = jnp.zeros_like(acc_ref)

    acc_ref[...] += jnp.dot(
        x_ref[...], w_ref[...], preferred_element_type=jnp.float32
    )

    @pl.when(k == pl.num_programs(2) - 1)
    def _():
        y = acc_ref[...] + b_ref[...].astype(jnp.float32)
        # LeakyReLU, negative_slope = 0.1 (matches PyTorch, 0 at y == 0).
        y = jnp.where(y > 0, y, 0.1 * y)
        o_ref[...] = y.astype(o_ref.dtype)


def mlp_forward(x, weight, bias, *, tm=512, tn=256, tk=512, k_whole_max=2048,
                matmul_dtype=None):
    """x: [..., n_in]; weight: [n_hidden, n_in] (PyTorch layout); bias: [n_hidden]."""
    n_in = x.shape[-1]
    n_hidden = weight.shape[0]
    lead_shape = x.shape[:-1]
    m = math.prod(lead_shape) if lead_shape else 1
    out_dtype = x.dtype

    # ---- flatten and lay the weight out as (K, N) once ---------------------
    x2d = x.reshape(m, n_in)
    w_kn = weight.T                      # (n_in, n_hidden) == (K, N), one-time
    b2d = bias.reshape(1, n_hidden)

    if matmul_dtype is not None:
        x2d = x2d.astype(matmul_dtype)
        w_kn = w_kn.astype(matmul_dtype)

    # ---- tile sizes ---------------------------------------------------------
    # M tile: sublane-aligned; shrink to the (8-rounded) problem size if small.
    tm = _round_up(m, 8) if m <= tm else tm
    # N tile: either the full N (always legal) or a multiple of 128.
    tn = n_hidden if n_hidden <= tn else tn
    # K: keep whole (tk == K, always legal) when modest; otherwise split with a
    # lane-dense tk and zero-pad K so no garbage enters the contraction.
    if n_in <= k_whole_max:
        tk = n_in
        k_pad = n_in
    else:
        k_pad = _round_up(n_in, tk)
        if k_pad != n_in:
            x2d = jnp.pad(x2d, ((0, 0), (0, k_pad - n_in)))
            w_kn = jnp.pad(w_kn, ((0, k_pad - n_in), (0, 0)))

    grid_m = pl.cdiv(m, tm)
    grid_n = pl.cdiv(n_hidden, tn)
    grid_k = k_pad // tk

    # ---- grid order: stream the larger operand exactly once ----------------
    w_bytes = n_in * n_hidden * jnp.dtype(w_kn.dtype).itemsize
    x_bytes = m * n_in * jnp.dtype(x2d.dtype).itemsize
    if w_bytes >= x_bytes:
        # N outer, M inner: weight tile resident across the inner M loop.
        grid = (grid_n, grid_m, grid_k)
        x_map = lambda n, mi, k: (mi, k)
        w_map = lambda n, mi, k: (k, n)
        b_map = lambda n, mi, k: (0, n)
        o_map = lambda n, mi, k: (mi, n)
    else:
        # M outer, N inner: x tile resident across the inner N loop.
        grid = (grid_m, grid_n, grid_k)
        x_map = lambda mi, n, k: (mi, k)
        w_map = lambda mi, n, k: (k, n)
        b_map = lambda mi, n, k: (0, n)
        o_map = lambda mi, n, k: (mi, n)

    # ---- VMEM budget (actual dtypes, double-buffered, with headroom) -------
    in_b = jnp.dtype(x2d.dtype).itemsize
    b_b = jnp.dtype(b2d.dtype).itemsize
    out_b = jnp.dtype(out_dtype).itemsize
    per_step = (2 * (tm * tk + tk * tn) * in_b
                + 2 * tn * b_b
                + 2 * tm * tn * out_b
                + tm * tn * 4)                      # accumulator scratch
    vmem_limit = int(min(48 * 1024 * 1024, max(32 * 1024 * 1024, 2 * per_step)))

    out = pl.pallas_call(
        _mlp_kernel,
        out_shape=jax.ShapeDtypeStruct((m, n_hidden), out_dtype),
        grid_spec=pltpu.PrefetchScalarGridSpec(
            num_scalar_prefetch=0,
            grid=grid,
            in_specs=[
                pl.BlockSpec((tm, tk), x_map),
                pl.BlockSpec((tk, tn), w_map),
                pl.BlockSpec((1, tn), b_map),
            ],
            out_specs=pl.BlockSpec((tm, tn), o_map),
            scratch_shapes=[pltpu.VMEM((tm, tn), jnp.float32)],
        ),
        compiler_params=pltpu.CompilerParams(
            dimension_semantics=("parallel", "parallel", "arbitrary"),
            vmem_limit_bytes=vmem_limit,
        ),
    )(x2d, w_kn, b2d)

    return out.reshape(*lead_shape, n_hidden)


def init_mlp_params(key, n_in, n_hidden, dtype=jnp.float32):
    """Deterministic init mimicking nn.init.orthogonal_ (weight) and zeros (bias)."""
    a = jax.random.normal(key, (n_hidden, n_in), dtype=jnp.float32)
    if n_hidden <= n_in:
        q, _ = jnp.linalg.qr(a.T)       # (n_in, n_hidden), orthonormal columns
        weight = q.T.astype(dtype)      # (n_hidden, n_in)
    else:
        q, _ = jnp.linalg.qr(a)         # (n_hidden, n_in)
        weight = q.astype(dtype)
    bias = jnp.zeros((n_hidden,), dtype=dtype)
    return weight, bias


if __name__ == "__main__":
    key = jax.random.PRNGKey(0)
    k_x, k_w = jax.random.split(key)

    batch, seq, n_in, n_hidden = 2, 8, 32, 32
    x = jax.random.normal(k_x, (batch, seq, n_in), dtype=jnp.float32)
    weight, bias = init_mlp_params(k_w, n_in, n_hidden)

    out = mlp_forward(x, weight, bias)
    out = jax.block_until_ready(out)

    # reference in plain JAX (eval-mode SharedDropout == identity)
    ref = x @ weight.T + bias
    ref = jnp.where(ref > 0, ref, 0.1 * ref)
    assert out.shape == (batch, seq, n_hidden)
    assert jnp.allclose(out, ref, atol=1e-5, rtol=1e-5)

    print("KERNEL_OK")
</pallas_src>

<mosaic_0001>
module attributes {stable_mosaic.version = 11 : i64} {
  func.func @_mlp_kernel(%arg0: i32, %arg1: i32, %arg2: i32, %arg3: memref<16x32xf32, #tpu.memory_space<vmem>>, %arg4: memref<32x32xf32, #tpu.memory_space<vmem>>, %arg5: memref<1x32xf32, #tpu.memory_space<vmem>>, %arg6: memref<16x32xf32, #tpu.memory_space<vmem>>, %arg7: memref<16x32xf32, #tpu.memory_space<vmem>>) attributes {dimension_semantics = [#tpu.dimension_semantics<parallel>, #tpu.dimension_semantics<parallel>, #tpu.dimension_semantics<arbitrary>], iteration_bounds = array<i64: 1, 1, 1>, scalar_prefetch = 0 : i64, scratch_operands = 1 : i64, tpu.core_type = #tpu.core_type<tc>, window_params = [{transform_indices = @transform_0, window_bounds = array<i64: 16, 32>}, {transform_indices = @transform_1, window_bounds = array<i64: 32, 32>}, {transform_indices = @transform_2, window_bounds = array<i64: 1, 32>}, {transform_indices = @transform_3, window_bounds = array<i64: 16, 32>}]} {
    %c0_i32 = arith.constant 0 : i32
    %0 = arith.cmpi eq, %arg2, %c0_i32 : i32
    %1 = arith.extui %0 : i1 to i32
    %c0_i32_0 = arith.constant 0 : i32
    %2 = arith.cmpi ne, %1, %c0_i32_0 : i32
    scf.if %2 {
      %cst_10 = arith.constant 0.000000e+00 : f32
      %12 = vector.broadcast %cst_10 : f32 to vector<16x32xf32>
      %c0_11 = arith.constant 0 : index
      %c0_12 = arith.constant 0 : index
      %13 = vector.load %arg7[%c0_11, %c0_12] : memref<16x32xf32, #tpu.memory_space<vmem>>, vector<16x32xf32>
      tpu.vector_store %arg7[%c0_11, %c0_12], %12 {strides = array<i32>} : memref<16x32xf32, #tpu.memory_space<vmem>>, vector<16x32xf32>,
    } else {
    }
    %c0 = arith.constant 0 : index
    %c0_1 = arith.constant 0 : index
    %3 = vector.load %arg7[%c0, %c0_1] : memref<16x32xf32, #tpu.memory_space<vmem>>, vector<16x32xf32>
    %c0_2 = arith.constant 0 : index
    %c0_3 = arith.constant 0 : index
    %4 = vector.load %arg3[%c0_2, %c0_3] : memref<16x32xf32, #tpu.memory_space<vmem>>, vector<16x32xf32>
    %c0_4 = arith.constant 0 : index
    %c0_5 = arith.constant 0 : index
    %5 = vector.load %arg4[%c0_4, %c0_5] : memref<32x32xf32, #tpu.memory_space<vmem>>, vector<32x32xf32>
    %cst = arith.constant dense<0.000000e+00> : vector<16x32xf32>
    %6 = tpu.matmul %4, %5, %cst {dimension_numbers = #tpu.dot_dimension_numbers<[1], [0], [0], [1], [0, 0, 1, 1], [], []>} : vector<16x32xf32>, vector<32x32xf32>, vector<16x32xf32> -> vector<16x32xf32>
    %7 = arith.addf %3, %6 : vector<16x32xf32>
    %c0_6 = arith.constant 0 : index
    %c0_7 = arith.constant 0 : index
    %8 = vector.load %arg7[%c0_6, %c0_7] : memref<16x32xf32, #tpu.memory_space<vmem>>, vector<16x32xf32>
    tpu.vector_store %arg7[%c0_6, %c0_7], %7 {strides = array<i32>} : memref<16x32xf32, #tpu.memory_space<vmem>>, vector<16x32xf32>,
    %c0_i32_8 = arith.constant 0 : i32
    %9 = arith.cmpi eq, %arg2, %c0_i32_8 : i32
    %10 = arith.extui %9 : i1 to i32
    %c0_i32_9 = arith.constant 0 : i32
    %11 = arith.cmpi ne, %10, %c0_i32_9 : i32
    scf.if %11 {
      %c0_10 = arith.constant 0 : index
      %c0_11 = arith.constant 0 : index
      %12 = vector.load %arg7[%c0_10, %c0_11] : memref<16x32xf32, #tpu.memory_space<vmem>>, vector<16x32xf32>
      %c0_12 = arith.constant 0 : index
      %c0_13 = arith.constant 0 : index
      %13 = vector.load %arg5[%c0_12, %c0_13] : memref<1x32xf32, #tpu.memory_space<vmem>>, vector<1x32xf32>
      %14 = vector.broadcast %13 : vector<1x32xf32> to vector<16x32xf32>
      %15 = arith.addf %12, %14 : vector<16x32xf32>
      %cst_14 = arith.constant 0.000000e+00 : f32
      %16 = vector.broadcast %cst_14 : f32 to vector<16x32xf32>
      %17 = arith.cmpf ogt, %15, %16 : vector<16x32xf32>
      %cst_15 = arith.constant 1.000000e-01 : f32
      %18 = vector.broadcast %cst_15 : f32 to vector<16x32xf32>
      %19 = arith.mulf %18, %15 : vector<16x32xf32>
      %20 = arith.select %17, %15, %19 : vector<16x32xi1>, vector<16x32xf32>
      %c0_16 = arith.constant 0 : index
      %c0_17 = arith.constant 0 : index
      %21 = vector.load %arg6[%c0_16, %c0_17] : memref<16x32xf32, #tpu.memory_space<vmem>>, vector<16x32xf32>
      tpu.vector_store %arg6[%c0_16, %c0_17], %20 {strides = array<i32>} : memref<16x32xf32, #tpu.memory_space<vmem>>, vector<16x32xf32>,
    } else {
    }
    return
  }
  func.func @transform_0(%arg0: i32, %arg1: i32, %arg2: i32) -> (i32, i32) {
    %c0_i32 = arith.constant 0 : i32
    return %arg1, %arg2 : i32, i32
  }
  func.func @transform_1(%arg0: i32, %arg1: i32, %arg2: i32) -> (i32, i32) {
    %c0_i32 = arith.constant 0 : i32
    return %arg2, %arg0 : i32, i32
  }
  func.func @transform_2(%arg0: i32, %arg1: i32, %arg2: i32) -> (i32, i32) {
    %c0_i32 = arith.constant 0 : i32
    %c0_i32_0 = arith.constant 0 : i32
    return %c0_i32, %arg0 : i32, i32
  }
  func.func @transform_3(%arg0: i32, %arg1: i32, %arg2: i32) -> (i32, i32) {
    %c0_i32 = arith.constant 0 : i32
    return %arg1, %arg0 : i32, i32
  }
}

</mosaic_0001>

<llo_original>
// kernel: tpu_custom_call.1
$region0: #{tpu_custom_call.1}
  #allocation0 [shape = 'u32[]', space=smem, size = 0x4, offset = 0x4, fixed_abs, tag = 'smem constant byte address 0x4 - core index']
  #allocation1 [shape = 'u32[144,128]{1,0:T(1,128)}', space=vmem, size = 0x12000, scoped, tag = 'internal scratch']
  #allocation2 [shape = 'f32[16,32]{1,0:T(8,128)}', space=vmem, size = 0x2000, scoped, tag = 'scratch operand']
  %s0 = inlined_call_operand.hbm [shape: f32[16,32], index: 0, kind: input, shape index: {}]
  %s1 = inlined_call_operand.hbm [shape: f32[32,32], index: 1, kind: input, shape index: {}]
  %s2 = inlined_call_operand.vmem [shape: f32[1,32], index: 2, kind: input, shape index: {}]
  %s3 = inlined_call_operand.hbm [shape: f32[16,32], index: 3, kind: output, shape index: {}]
  %s4 = sld [smem:[#allocation0]]
  $region38: #{tpu_custom_call.1} parent=0
    _
  %s6 = ssub.s32 1, %s4
  %s7 = scalar_select 0, %s6, %s4
  $region1: #{tpu_custom_call.1} parent=0
    #allocation3 [shape = 'u8[8192]{0}', space=vmem, size = 0x2000, scoped, tag = 'input window, operand 0, single buffered']
    #allocation4 [shape = 's32[1]{0}', space=sflag, size = 0x4, scoped, tag = 'scoped memory for tpu_custom_call.1']
    #allocation5 [shape = 's32[1]{0}', space=sflag, size = 0x4, scoped, tag = 'scoped memory for tpu_custom_call.1']
    #allocation6 [shape = 'u8[16384]{0}', space=vmem, size = 0x4000, scoped, tag = 'input window, operand 1, single buffered']
    #allocation7 [shape = 's32[1]{0}', space=sflag, size = 0x4, scoped, tag = 'scoped memory for tpu_custom_call.1']
    #allocation8 [shape = 'u8[8192]{0}', space=vmem, size = 0x2000, scoped, tag = 'output window, operand 0, single buffered']
    %8 = vsyncpa [#allocation4], 0
    %9 = vsyncpa [#allocation7], 0
    %10 = vsyncpa [#allocation5], 0
    // Predicated region
    $region2: #{tpu_custom_call.1} parent=1 // pred_check
      _
    $region3: #{tpu_custom_call.1} parent=1 // pred_check_branch
      %12 = sbr.rel (0) target = $region5
    $region4: #{tpu_custom_call.1} parent=1 // pred_region
      %s14 = ssub.s32 256, 256
      %15 = vsyncadd [#allocation4], %s14
      %s16 = sshll.u32 [#allocation3], 4
      %s17 = int_to_ptr.vmem [resolvable:$true] %s16
      %22 = dma.hbm_to_vmem [thread:$0]  %s0, 256, %s17, [#allocation4], 128, 128, 8
    $region5: #{tpu_custom_call.1} parent=1 // pred_fallthru
      _
    // Predicated region
    $region6: #{tpu_custom_call.1} parent=1 // pred_check
      _
    $region7: #{tpu_custom_call.1} parent=1 // pred_check_branch
      %24 = sbr.rel (0) target = $region9
    $region8: #{tpu_custom_call.1} parent=1 // pred_region
      %s26 = ssub.s32 512, 512
      %27 = vsyncadd [#allocation7], %s26
      %s28 = sshll.u32 [#allocation6], 4
      %s29 = int_to_ptr.vmem [resolvable:$true] %s28
      %34 = dma.hbm_to_vmem [thread:$0]  %s1, 512, %s29, [#allocation7], 128, 128, 8
    $region9: #{tpu_custom_call.1} parent=1 // pred_fallthru
      _
    // Predicated region
    $region10: #{tpu_custom_call.1} parent=1 // pred_check
      _
    $region11: #{tpu_custom_call.1} parent=1 // pred_check_branch
      %36 = sbr.rel (0) target = $region13
    $region12: #{tpu_custom_call.1} parent=1 // pred_region
      _
    $region13: #{tpu_custom_call.1} parent=1 // pred_fallthru
      _
    // Predicated region
    $region14: #{tpu_custom_call.1} parent=1 // pred_check
      _
    $region15: #{tpu_custom_call.1} parent=1 // pred_check_branch
      %38 = sbr.rel (0) target = $region17
    $region16: #{tpu_custom_call.1} parent=1 // pred_region
      %39 = dma.done [#allocation4], 256
    $region17: #{tpu_custom_call.1} parent=1 // pred_fallthru
      _
    // Predicated region
    $region18: #{tpu_custom_call.1} parent=1 // pred_check
      _
    $region19: #{tpu_custom_call.1} parent=1 // pred_check_branch
      %41 = sbr.rel (0) target = $region21
    $region20: #{tpu_custom_call.1} parent=1 // pred_region
      %42 = dma.done [#allocation7], 512
    $region21: #{tpu_custom_call.1} parent=1 // pred_fallthru
      _
    %p43 = scmp.eq.s32.totalorder 0, 0
    // Predicated region
    $region22: #{tpu_custom_call.1} parent=1 // pred_check
      %p44 = pneg %p43
    $region23: #{tpu_custom_call.1} parent=1 // pred_check_branch
      %46 = sbr.rel (%p44) target = $region25
    $region24: #{tpu_custom_call.1} parent=1 // pred_region
      %vm47 = vcmask 261120
      %48 = vst.msk [vmem:[#allocation2] sm:$0xff] %vm47, 0.0
      %49 = vst.msk [vmem:[#allocation2 + $0x8] sm:$0xff] %vm47, 0.0
    $region25: #{tpu_custom_call.1} parent=1 // pred_fallthru
      _
    %v50 = vld [vmem:[#allocation2] sm:$0xff]
    %v51 = vld [vmem:[#allocation2 + $0x8] sm:$0xff]
    %v52 = vld [vmem:[#allocation3] sm:$0xff]
    %v53 = vld [vmem:[#allocation3 + $0x8] sm:$0xff]
    %v54 = vld [vmem:[#allocation6] sm:$0xff]
    %v55 = vld [vmem:[#allocation6 + $0x8] sm:$0xff]
    %v56 = vld [vmem:[#allocation6 + $0x10] sm:$0xff]
    %v57 = vld [vmem:[#allocation6 + $0x18] sm:$0xff]
    %vm58 = vcmask 261120
    %v60 = vsel %vm58, %v52, 0
    %v63 = vsel %vm58, %v53, 0
    %65 = vmatprep.subr.mxu0 0.0
    %66 = vmatpush1.msra.mxu0 %v54
    %67 = vmatprep.subr.mxu0 0.0
    %68 = vmatpush1.msra.mxu0 %v55
    %69 = vmatprep.subr.mxu0 0.0
    %70 = vmatpush1.msra.mxu0 %v56
    %71 = vmatprep.subr.mxu0 0.0
    %72 = vmatpush1.msra.mxu0 %v57
    %73 = vmatprep.subr.mxu0 0.0
    %74 = vmatpush1.msra.mxu0 0.0
    %75 = vmatprep.subr.mxu0 0.0
    %76 = vmatpush1.msra.mxu0 0.0
    %77 = vmatprep.subr.mxu0 0.0
    %78 = vmatpush1.msra.mxu0 0.0
    %79 = vmatprep.subr.mxu0 0.0
    %80 = vmatpush1.msra.mxu0 0.0
    %81 = vmatprep.subr.mxu0 0.0
    %82 = vmatpush1.msra.mxu0 0.0
    %83 = vmatprep.subr.mxu0 0.0
    %84 = vmatpush1.msra.mxu0 0.0
    %85 = vmatprep.subr.mxu0 0.0
    %86 = vmatpush1.msra.mxu0 0.0
    %87 = vmatprep.subr.mxu0 0.0
    %88 = vmatpush1.msra.mxu0 0.0
    %89 = vmatprep.subr.mxu0 0.0
    %90 = vmatpush1.msra.mxu0 0.0
    %91 = vmatprep.subr.mxu0 0.0
    %92 = vmatpush1.msra.mxu0 0.0
    %93 = vmatprep.subr.mxu0 0.0
    %94 = vmatpush1.msra.mxu0 0.0
    %95 = vmatprep.subr.mxu0 0.0
    %96 = vmatpush1.msra.mxu0 0.0
    %97 = vmatprep.subr.mxu0 0.0
    %98 = vmatpush1.msra.mxu0 0.0
    %99 = vmatprep.subr.mxu0 0.0
    %100 = vmatpush1.msra.mxu0 0.0
    %101 = vmatprep.subr.mxu0 0.0
    %102 = vmatpush1.msra.mxu0 0.0
    %103 = vmatprep.subr.mxu0 0.0
    %104 = vmatpush1.msra.mxu0 0.0
    %105 = vmatprep.subr.mxu0 0.0
    %106 = vmatpush1.msra.mxu0 0.0
    %107 = vmatprep.subr.mxu0 0.0
    %108 = vmatpush1.msra.mxu0 0.0
    %109 = vmatprep.subr.mxu0 0.0
    %110 = vmatpush1.msra.mxu0 0.0
    %111 = vmatprep.subr.mxu0 0.0
    %112 = vmatpush1.msra.mxu0 0.0
    %113 = vmatprep.subr.mxu0 0.0
    %114 = vmatpush1.msra.mxu0 0.0
    %115 = vmatprep.subr.mxu0 0.0
    %116 = vmatpush1.msra.mxu0 0.0
    %117 = vmatprep.subr.mxu0 0.0
    %118 = vmatpush1.msra.mxu0 0.0
    %119 = vmatprep.subr.mxu0 0.0
    %120 = vmatpush1.msra.mxu0 0.0
    %121 = vmatprep.subr.mxu0 0.0
    %122 = vmatpush1.msra.mxu0 0.0
    %123 = vmatprep.subr.mxu0 0.0
    %124 = vmatpush1.msra.mxu0 0.0
    %125 = vmatprep.subr.mxu0 0.0
    %126 = vmatpush1.msra.mxu0 0.0
    %127 = vmatprep.subr.mxu0 0.0
    %128 = vmatpush1.msra.mxu0 0.0
    %129 = vmatprep.mubr.f32.mxu0 0.0
    %130 = vmatmul.mubr.f32.gmra.mrb[0].mxu0 %v60
    %v131 = vpop.f32.mrb[0].mxu0
    %v132 = vadd.f32 0.0, %v131
    %v133 = vpop.f32.mrb[0].mxu0
    %134 = vmatprep.mubr.f32.mxu0 0.0
    %135 = vmatmul.mubr.f32.gmra.mrb[0].mxu0 %v63
    %v136 = vpop.f32.mrb[0].mxu0
    %v137 = vadd.f32 0.0, %v136
    %v138 = vpop.f32.mrb[0].mxu0
    %139 = vdwg.mxu0
    %v140 = vadd.f32 %v50, %v132
    %v141 = vadd.f32 %v51, %v137
    %142 = vst.msk [vmem:[#allocation2] sm:$0xff] %vm58, %v140
    %143 = vst.msk [vmem:[#allocation2 + $0x8] sm:$0xff] %vm58, %v141
    // Predicated region
    $region26: #{tpu_custom_call.1} parent=1 // pred_check
      %p144 = pneg %p43
    $region27: #{tpu_custom_call.1} parent=1 // pred_check_branch
      %146 = sbr.rel (%p144) target = $region29
    $region28: #{tpu_custom_call.1} parent=1 // pred_region
      %v147 = vld [vmem:[#allocation2] sm:$0xff]
      %v148 = vld [vmem:[#allocation2 + $0x8] sm:$0xff]
      %v149 = vld [vmem:[%s2] sm:$0x1]
      %v151 = vlaneseq
      %v152 = vshrl.u32 %v151, 7
      %v153 = vsub.s32 0, %v152
      %v154 = vrot.slane %v149, %v153
      %v156 = vadd.f32 %v147, %v154
      %v157 = vadd.f32 %v148, %v154
      %vm158 = vcmp.gt.f32.partialorder %v156, 0.0
      %vm159 = vcmp.gt.f32.partialorder %v157, 0.0
      %v160 = vmul.f32 %v156, 0.1
      %v161 = vmul.f32 %v157, 0.1
      %v162 = vsel %vm158, %v156, %v160
      %v163 = vsel %vm159, %v157, %v161
      %164 = vst.msk [vmem:[#allocation8] sm:$0xff] %vm58, %v162
      %165 = vst.msk [vmem:[#allocation8 + $0x8] sm:$0xff] %vm58, %v163
    $region29: #{tpu_custom_call.1} parent=1 // pred_fallthru
      _
    // Predicated region
    $region30: #{tpu_custom_call.1} parent=1 // pred_check
      _
    $region31: #{tpu_custom_call.1} parent=1 // pred_check_branch
      %167 = sbr.rel (0) target = $region33
    $region32: #{tpu_custom_call.1} parent=1 // pred_region
      %s169 = ssub.s32 256, 256
      %170 = vsyncadd [#allocation5], %s169
      %s171 = sshll.u32 [#allocation8], 4
      %s172 = int_to_ptr.vmem [resolvable:$true] %s171
      %177 = dma.vmem_to_hbm [thread:$0]  %s172, 256, %s3, [#allocation5], 128, 128, 8
    $region33: #{tpu_custom_call.1} parent=1 // pred_fallthru
      _
    // Predicated region
    $region34: #{tpu_custom_call.1} parent=1 // pred_check
      _
    $region35: #{tpu_custom_call.1} parent=1 // pred_check_branch
      %179 = sbr.rel (0) target = $region37
    $region36: #{tpu_custom_call.1} parent=1 // pred_region
      %180 = dma.done [#allocation5], 256
    $region37: #{tpu_custom_call.1} parent=1 // pred_fallthru
      _
    %181 = vsyncpa [#allocation4], 1
    %182 = vsyncpa [#allocation7], 1
    %183 = vsyncpa [#allocation5], 1

</llo_original>
